<compile_context>
chip_gen: v6e
topology: v6e:2x2x1
jax: 0.10.0
libtpu: 0.0.40
codegen_flags: <defaults>
</compile_context>

<pallas_src>
import functools

import jax
import jax.numpy as jnp
from jax.experimental import pallas as pl
from jax.experimental.pallas import tpu as pltpu

_BN_EPS = 1e-5
_FEAT = 16
_K = 768
_MAX_TB = 2048          # batch-tile cap (rows) for the streaming fc1/fc2 kernel
_SINGLE_TILE_MAX = 256  # <= this: one tile; above: force >= 2 tiles (v7x megacore)


# --------------------------- kernel -----------------------------------------
def _fc_stats_kernel(honour_ref, project_ref, w1_ref, b1_ref, w2_ref, b2_ref,
                     hp_ref, stats_ref, *, batch, tile):
    """fc1/fc2 (bf16 MXU dots, f32 accumulation) + per-tile BN partial stats.

    Writes:
      hp_ref    : (tile, 32)  raw [fc1 | fc2] activations (pre-BN), f32
      stats_ref : (1, 1, 64)  [sum(hp), sumsq(hp)] over the tile's rows, f32
                  (masked phantom rows contribute exactly the fc bias).
    """
    x_h = honour_ref[...]
    x_p = project_ref[...]
    if batch % tile != 0:
        # Ragged last tile: zero the out-of-range rows BEFORE the dots so each
        # phantom row contributes exactly b1/b2 to the stats (corrected
        # analytically in the wrapper).  OOB block data is unspecified.
        row = (pl.program_id(0) * tile
               + jax.lax.broadcasted_iota(jnp.int32, (tile, 1), 0))
        valid = row < batch
        x_h = jnp.where(valid, x_h, 0.0)
        x_p = jnp.where(valid, x_p, 0.0)

    h = jnp.dot(x_h.astype(jnp.bfloat16), w1_ref[...],
                preferred_element_type=jnp.float32) + b1_ref[...]
    p = jnp.dot(x_p.astype(jnp.bfloat16), w2_ref[...],
                preferred_element_type=jnp.float32) + b2_ref[...]

    hp = jnp.concatenate([h, p], axis=-1)                      # (tile, 32)
    hp_ref[...] = hp

    s = jnp.sum(hp, axis=0, keepdims=True)                     # (1, 32)
    ss = jnp.sum(hp * hp, axis=0, keepdims=True)               # (1, 32)
    stats_ref[...] = jnp.concatenate([s, ss], axis=-1)[None]   # (1, 1, 64)


# --------------------------- wrapper -----------------------------------------
def network4_forward(location, level, grades, apply_, ranking, ranking_absolu,
                     label, score, honour, project, params):
    del label, score  # not used by the reference forward pass

    B, K = honour.shape
    F = _FEAT

    # ---- batch tiling: >= 2 tiles once B is large (v7x has 2 TCs) ----------
    if B <= _SINGLE_TILE_MAX:
        tb = B
    else:
        half = (B + 1) // 2
        tb = min(_MAX_TB, ((half + 7) // 8) * 8)
    n_tiles = -(-B // tb)
    n_pad = n_tiles * tb - B  # phantom rows in the last (masked) tile

    w1 = params["w1"].astype(jnp.bfloat16)
    w2 = params["w2"].astype(jnp.bfloat16)
    b1 = params["b1"]
    b2 = params["b2"]

    def batch_spec(cols):
        return pl.BlockSpec((tb, cols), lambda i: (i, 0))

    def const_spec(shape):
        return pl.BlockSpec(shape, lambda i: (0,) * len(shape))

    # VMEM budget: double-buffered f32 input tiles dominate.  Stay well under
    # v7x's 64 MiB physical VMEM; v5e/v6e have 128 MiB.
    vmem_bytes = (2 * (2 * tb * K * 4)        # honour + project, double-buffered
                  + 2 * (tb * 2 * F * 4)      # hp output, double-buffered
                  + 4 * K * F * 2             # bf16 weights (x2 buffers)
                  + (4 << 20))                # headroom
    vmem_limit = int(min(max(vmem_bytes, 16 << 20), 56 << 20))

    kernel = functools.partial(_fc_stats_kernel, batch=B, tile=tb)
    hp_raw, stats = pl.pallas_call(
        kernel,
        grid=(n_tiles,),
        in_specs=[batch_spec(K), batch_spec(K),
                  const_spec((K, F)), const_spec((1, F)),
                  const_spec((K, F)), const_spec((1, F))],
        out_specs=[batch_spec(2 * F),
                   pl.BlockSpec((1, 1, 4 * F), lambda i: (i, 0, 0))],
        out_shape=[jax.ShapeDtypeStruct((B, 2 * F), jnp.float32),
                   jax.ShapeDtypeStruct((n_tiles, 1, 4 * F), jnp.float32)],
        compiler_params=pltpu.CompilerParams(
            dimension_semantics=("parallel",),
            vmem_limit_bytes=vmem_limit),
        cost_estimate=pl.CostEstimate(
            flops=2 * 2 * n_tiles * tb * K * F,
            transcendentals=0,
            bytes_accessed=2 * B * K * 4 + B * 2 * F * 4),
    )(honour, project, w1, b1, w2, b2)

    # ---- full-batch BN statistics (training mode, biased variance) ---------
    sums = jnp.sum(stats, axis=(0, 1))                    # (64,)
    bias = jnp.concatenate([b1[0], b2[0]])                # (32,): phantom-row value
    sum_hp = sums[:2 * F] - n_pad * bias
    ssq_hp = sums[2 * F:] - n_pad * bias * bias
    mu = sum_hp / B
    var = jnp.maximum(ssq_hp / B - mu * mu, 0.0)
    gamma = jnp.concatenate([params["g1"][0], params["g2"][0]])
    beta = jnp.concatenate([params["beta1"][0], params["beta2"][0]])
    scale = gamma * jax.lax.rsqrt(var + _BN_EPS)
    shift = beta - mu * scale

    # ---- tiny tail in plain JAX (XLA fuses; ~170 B/row of traffic) ---------
    hp_act = jnp.maximum(hp_raw * scale + shift, 0.0)          # BN + ReLU, (B, 32)
    extras = jnp.concatenate(
        [location, level, grades, apply_, ranking, ranking_absolu], axis=1
    ).astype(jnp.float32)                                       # (B, 6)
    feats = jnp.concatenate([hp_act, extras], axis=1)           # (B, 38)
    w3 = jnp.concatenate([params["w3h"], params["w3p"], params["w3e"]], axis=0)
    return jax.nn.sigmoid(feats @ w3 + params["b3"])


# --------------------------- params / reference ------------------------------
def init_params(key):
    k = jax.random.split(key, 6)
    # Linear weights: torch stores (out, in), init uniform(-0.2, 0.2); we keep
    # (in, out) so x @ W_in_out == x @ W_torch.T.
    w1 = jax.random.uniform(k[0], (768, 16), jnp.float32, -0.2, 0.2)
    w2 = jax.random.uniform(k[1], (768, 16), jnp.float32, -0.2, 0.2)
    w3 = jax.random.uniform(k[2], (38, 1), jnp.float32, -0.2, 0.2)
    # Linear biases keep torch default init: U(-1/sqrt(fan_in), 1/sqrt(fan_in)).
    b1 = jax.random.uniform(k[3], (1, 16), jnp.float32, -1.0, 1.0) / jnp.sqrt(768.0)
    b2 = jax.random.uniform(k[4], (1, 16), jnp.float32, -1.0, 1.0) / jnp.sqrt(768.0)
    b3 = jax.random.uniform(k[5], (1, 1), jnp.float32, -1.0, 1.0) / jnp.sqrt(38.0)
    return {
        "w1": w1, "b1": b1,
        "g1": jnp.ones((1, 16), jnp.float32), "beta1": jnp.zeros((1, 16), jnp.float32),
        "w2": w2, "b2": b2,
        "g2": jnp.ones((1, 16), jnp.float32), "beta2": jnp.zeros((1, 16), jnp.float32),
        "w3h": w3[0:16, :], "w3p": w3[16:32, :], "w3e": w3[32:38, :], "b3": b3,
    }


def _reference(location, level, grades, apply_, ranking, ranking_absolu,
               honour, project, params):
    def bn_relu(x, g, b):
        mu = jnp.mean(x, axis=0, keepdims=True)
        var = jnp.mean((x - mu) ** 2, axis=0, keepdims=True)   # biased (training mode)
        return jnp.maximum((x - mu) * jax.lax.rsqrt(var + _BN_EPS) * g + b, 0.0)

    h = bn_relu(honour @ params["w1"] + params["b1"], params["g1"], params["beta1"])
    p = bn_relu(project @ params["w2"] + params["b2"], params["g2"], params["beta2"])
    feats = jnp.concatenate(
        [h, p, location, level, grades, apply_, ranking, ranking_absolu], axis=1)
    w3 = jnp.concatenate([params["w3h"], params["w3p"], params["w3e"]], axis=0)
    return jax.nn.sigmoid(feats @ w3 + params["b3"])


if __name__ == "__main__":
    key = jax.random.PRNGKey(0)
    kp, kd = jax.random.split(key)
    params = init_params(kp)
    fwd = jax.jit(network4_forward)

    # B=8   : single-tile path.
    # B=300 : multi-tile path with a ragged, in-kernel-masked last tile
    #         (tb=152, 2 tiles, 4 phantom rows).
    for B in (8, 300):
        ks = jax.random.split(jax.random.fold_in(kd, B), 10)
        honour = jax.random.normal(ks[0], (B, 768), jnp.float32)
        project = jax.random.normal(ks[1], (B, 768), jnp.float32)
        location = jax.random.normal(ks[2], (B, 1), jnp.float32)
        level = jax.random.normal(ks[3], (B, 1), jnp.float32)
        grades = jax.random.normal(ks[4], (B, 1), jnp.float32)
        apply_ = jax.random.normal(ks[5], (B, 1), jnp.float32)
        ranking = jax.random.normal(ks[6], (B, 1), jnp.float32)
        ranking_absolu = jax.random.normal(ks[7], (B, 1), jnp.float32)
        label = jax.random.normal(ks[8], (B, 1), jnp.float32)   # unused by forward
        score = jax.random.normal(ks[9], (B, 1), jnp.float32)   # unused by forward

        out = fwd(location, level, grades, apply_, ranking, ranking_absolu,
                  label, score, honour, project, params)
        out = jax.block_until_ready(out)

        ref = _reference(location, level, grades, apply_, ranking, ranking_absolu,
                         honour, project, params)
        assert out.shape == (B, 1)
        assert bool(jnp.all(jnp.abs(out - ref) < 1e-2)), \
            f"kernel disagrees with JAX reference at B={B}"

    print("KERNEL_OK")
</pallas_src>

<mosaic_0001>
module attributes {stable_mosaic.version = 11 : i64} {
  func.func @_fc_stats_kernel(%arg0: i32, %arg1: memref<8x768xf32, #tpu.memory_space<vmem>>, %arg2: memref<8x768xf32, #tpu.memory_space<vmem>>, %arg3: memref<768x16xbf16, #tpu.memory_space<vmem>>, %arg4: memref<1x16xf32, #tpu.memory_space<vmem>>, %arg5: memref<768x16xbf16, #tpu.memory_space<vmem>>, %arg6: memref<1x16xf32, #tpu.memory_space<vmem>>, %arg7: memref<8x32xf32, #tpu.memory_space<vmem>>, %arg8: memref<1x1x64xf32, #tpu.memory_space<vmem>>) attributes {dimension_semantics = [#tpu.dimension_semantics<parallel>], iteration_bounds = array<i64: 1>, scalar_prefetch = 0 : i64, scratch_operands = 0 : i64, tpu.core_type = #tpu.core_type<tc>, window_params = [{transform_indices = @transform_0, window_bounds = array<i64: 8, 768>}, {transform_indices = @transform_1, window_bounds = array<i64: 8, 768>}, {pipeline_mode = #tpu.pipeline_mode<synchronous>, transform_indices = @transform_2, window_bounds = array<i64: 768, 16>}, {pipeline_mode = #tpu.pipeline_mode<synchronous>, transform_indices = @transform_3, window_bounds = array<i64: 1, 16>}, {pipeline_mode = #tpu.pipeline_mode<synchronous>, transform_indices = @transform_4, window_bounds = array<i64: 768, 16>}, {pipeline_mode = #tpu.pipeline_mode<synchronous>, transform_indices = @transform_5, window_bounds = array<i64: 1, 16>}, {transform_indices = @transform_6, window_bounds = array<i64: 8, 32>}, {transform_indices = @transform_7, window_bounds = array<i64: 1, 1, 64>}]} {
    %c0 = arith.constant 0 : index
    %c0_0 = arith.constant 0 : index
    %0 = vector.load %arg1[%c0, %c0_0] : memref<8x768xf32, #tpu.memory_space<vmem>>, vector<8x768xf32>
    %c0_1 = arith.constant 0 : index
    %c0_2 = arith.constant 0 : index
    %1 = vector.load %arg2[%c0_1, %c0_2] : memref<8x768xf32, #tpu.memory_space<vmem>>, vector<8x768xf32>
    %2 = arith.truncf %0 : vector<8x768xf32> to vector<8x768xbf16>
    %c0_3 = arith.constant 0 : index
    %c0_4 = arith.constant 0 : index
    %3 = vector.load %arg3[%c0_3, %c0_4] : memref<768x16xbf16, #tpu.memory_space<vmem>>, vector<768x16xbf16>
    %cst = arith.constant dense<0.000000e+00> : vector<8x16xf32>
    %4 = tpu.matmul %2, %3, %cst {dimension_numbers = #tpu.dot_dimension_numbers<[1], [0], [0], [1], [0, 0, 1, 1], [], []>} : vector<8x768xbf16>, vector<768x16xbf16>, vector<8x16xf32> -> vector<8x16xf32>
    %c0_5 = arith.constant 0 : index
    %c0_6 = arith.constant 0 : index
    %5 = vector.load %arg4[%c0_5, %c0_6] : memref<1x16xf32, #tpu.memory_space<vmem>>, vector<1x16xf32>
    %6 = vector.broadcast %5 : vector<1x16xf32> to vector<8x16xf32>
    %7 = arith.addf %4, %6 : vector<8x16xf32>
    %8 = arith.truncf %1 : vector<8x768xf32> to vector<8x768xbf16>
    %c0_7 = arith.constant 0 : index
    %c0_8 = arith.constant 0 : index
    %9 = vector.load %arg5[%c0_7, %c0_8] : memref<768x16xbf16, #tpu.memory_space<vmem>>, vector<768x16xbf16>
    %cst_9 = arith.constant dense<0.000000e+00> : vector<8x16xf32>
    %10 = tpu.matmul %8, %9, %cst_9 {dimension_numbers = #tpu.dot_dimension_numbers<[1], [0], [0], [1], [0, 0, 1, 1], [], []>} : vector<8x768xbf16>, vector<768x16xbf16>, vector<8x16xf32> -> vector<8x16xf32>
    %c0_10 = arith.constant 0 : index
    %c0_11 = arith.constant 0 : index
    %11 = vector.load %arg6[%c0_10, %c0_11] : memref<1x16xf32, #tpu.memory_space<vmem>>, vector<1x16xf32>
    %12 = vector.broadcast %11 : vector<1x16xf32> to vector<8x16xf32>
    %13 = arith.addf %10, %12 : vector<8x16xf32>
    %14 = tpu.concatenate %7, %13 in 1 : vector<8x16xf32>, vector<8x16xf32> -> vector<8x32xf32>
    %c0_12 = arith.constant 0 : index
    %c0_13 = arith.constant 0 : index
    %15 = vector.load %arg7[%c0_12, %c0_13] : memref<8x32xf32, #tpu.memory_space<vmem>>, vector<8x32xf32>
    tpu.vector_store %arg7[%c0_12, %c0_13], %14 {strides = array<i32>} : memref<8x32xf32, #tpu.memory_space<vmem>>, vector<8x32xf32>,
    %cst_14 = arith.constant dense<0.000000e+00> : vector<32xf32>
    %16 = vector.multi_reduction <add>, %14, %cst_14 [0] : vector<8x32xf32> to vector<32xf32>
    %17 = vector.shape_cast %16 : vector<32xf32> to vector<1x32xf32>
    %18 = arith.mulf %14, %14 : vector<8x32xf32>
    %cst_15 = arith.constant dense<0.000000e+00> : vector<32xf32>
    %19 = vector.multi_reduction <add>, %18, %cst_15 [0] : vector<8x32xf32> to vector<32xf32>
    %20 = vector.shape_cast %19 : vector<32xf32> to vector<1x32xf32>
    %21 = tpu.concatenate %17, %20 in 1 : vector<1x32xf32>, vector<1x32xf32> -> vector<1x64xf32>
    %22 = vector.shape_cast %21 : vector<1x64xf32> to vector<1x1x64xf32>
    %c0_16 = arith.constant 0 : index
    %c0_17 = arith.constant 0 : index
    %c0_18 = arith.constant 0 : index
    %23 = vector.load %arg8[%c0_16, %c0_17, %c0_18] : memref<1x1x64xf32, #tpu.memory_space<vmem>>, vector<1x1x64xf32>
    tpu.vector_store %arg8[%c0_16, %c0_17, %c0_18], %22 {strides = array<i32>} : memref<1x1x64xf32, #tpu.memory_space<vmem>>, vector<1x1x64xf32>,
    return
  }
  func.func @transform_0(%arg0: i32) -> (i32, i32) {
    %c0_i32 = arith.constant 0 : i32
    %c0_i32_0 = arith.constant 0 : i32
    return %arg0, %c0_i32 : i32, i32
  }
  func.func @transform_1(%arg0: i32) -> (i32, i32) {
    %c0_i32 = arith.constant 0 : i32
    %c0_i32_0 = arith.constant 0 : i32
    return %arg0, %c0_i32 : i32, i32
  }
  func.func @transform_2(%arg0: i32) -> (i32, i32) {
    %c0_i32 = arith.constant 0 : i32
    %c0_i32_0 = arith.constant 0 : i32
    %c0_i32_1 = arith.constant 0 : i32
    return %c0_i32, %c0_i32_0 : i32, i32
  }
  func.func @transform_3(%arg0: i32) -> (i32, i32) {
    %c0_i32 = arith.constant 0 : i32
    %c0_i32_0 = arith.constant 0 : i32
    %c0_i32_1 = arith.constant 0 : i32
    return %c0_i32, %c0_i32_0 : i32, i32
  }
  func.func @transform_4(%arg0: i32) -> (i32, i32) {
    %c0_i32 = arith.constant 0 : i32
    %c0_i32_0 = arith.constant 0 : i32
    %c0_i32_1 = arith.constant 0 : i32
    return %c0_i32, %c0_i32_0 : i32, i32
  }
  func.func @transform_5(%arg0: i32) -> (i32, i32) {
    %c0_i32 = arith.constant 0 : i32
    %c0_i32_0 = arith.constant 0 : i32
    %c0_i32_1 = arith.constant 0 : i32
    return %c0_i32, %c0_i32_0 : i32, i32
  }
  func.func @transform_6(%arg0: i32) -> (i32, i32) {
    %c0_i32 = arith.constant 0 : i32
    %c0_i32_0 = arith.constant 0 : i32
    return %arg0, %c0_i32 : i32, i32
  }
  func.func @transform_7(%arg0: i32) -> (i32, i32, i32) {
    %c0_i32 = arith.constant 0 : i32
    %c0_i32_0 = arith.constant 0 : i32
    %c0_i32_1 = arith.constant 0 : i32
    return %arg0, %c0_i32, %c0_i32_0 : i32, i32, i32
  }
}

</mosaic_0001>

<llo_original>
// kernel: network4_forward.1
$region0: #{network4_forward.1}
  #allocation0 [shape = 'u32[]', space=smem, size = 0x4, offset = 0x4, fixed_abs, tag = 'smem constant byte address 0x4 - core index']
  #allocation1 [shape = 'u32[144,128]{1,0:T(1,128)}', space=vmem, size = 0x12000, scoped, tag = 'internal scratch']
  %s0 = inlined_call_operand.vmem [shape: f32[8,768], index: 0, kind: input, shape index: {}]
  %s1 = inlined_call_operand.vmem [shape: f32[8,768], index: 1, kind: input, shape index: {}]
  %s2 = inlined_call_operand.vmem [shape: bf16[768,16], index: 2, kind: input, shape index: {}]
  %s3 = inlined_call_operand.vmem [shape: f32[1,16], index: 3, kind: input, shape index: {}]
  %s4 = inlined_call_operand.vmem [shape: bf16[768,16], index: 4, kind: input, shape index: {}]
  %s5 = inlined_call_operand.vmem [shape: f32[1,16], index: 5, kind: input, shape index: {}]
  %s6 = inlined_call_operand.vmem [shape: f32[8,32], index: 6, kind: output, shape index: {0}]
  %s7 = inlined_call_operand.vmem [shape: f32[1,1,64], index: 7, kind: output, shape index: {1}]
  %8 = xla_tuple %s6, %s7
  %s9 = sld [smem:[#allocation0]]
  $region42: #{network4_forward.1} parent=0
    _
  %s11 = ssub.s32 1, %s9
  %s12 = scalar_select 0, %s11, %s9
  // Predicated region
  $region2: #{network4_forward.1} parent=0 // pred_check
    _
  $region3: #{network4_forward.1} parent=0 // pred_check_branch
    %14 = sbr.rel (0) target = $region5
  $region4: #{network4_forward.1} parent=0 // pred_region
    _
  $region5: #{network4_forward.1} parent=0 // pred_fallthru
    _
  // Predicated region
  $region6: #{network4_forward.1} parent=0 // pred_check
    _
  $region7: #{network4_forward.1} parent=0 // pred_check_branch
    %16 = sbr.rel (0) target = $region9
  $region8: #{network4_forward.1} parent=0 // pred_region
    _
  $region9: #{network4_forward.1} parent=0 // pred_fallthru
    _
  // Predicated region
  $region10: #{network4_forward.1} parent=0 // pred_check
    _
  $region11: #{network4_forward.1} parent=0 // pred_check_branch
    %18 = sbr.rel (0) target = $region13
  $region12: #{network4_forward.1} parent=0 // pred_region
    _
  $region13: #{network4_forward.1} parent=0 // pred_fallthru
    _
  // Predicated region
  $region14: #{network4_forward.1} parent=0 // pred_check
    _
  $region15: #{network4_forward.1} parent=0 // pred_check_branch
    %20 = sbr.rel (0) target = $region17
  $region16: #{network4_forward.1} parent=0 // pred_region
    _
  $region17: #{network4_forward.1} parent=0 // pred_fallthru
    _
  // Predicated region
  $region18: #{network4_forward.1} parent=0 // pred_check
    _
  $region19: #{network4_forward.1} parent=0 // pred_check_branch
    %22 = sbr.rel (0) target = $region21
  $region20: #{network4_forward.1} parent=0 // pred_region
    _
  $region21: #{network4_forward.1} parent=0 // pred_fallthru
    _
  // Predicated region
  $region22: #{network4_forward.1} parent=0 // pred_check
    _
  $region23: #{network4_forward.1} parent=0 // pred_check_branch
    %24 = sbr.rel (0) target = $region25
  $region24: #{network4_forward.1} parent=0 // pred_region
    _
  $region25: #{network4_forward.1} parent=0 // pred_fallthru
    _
  %v26 = vld [vmem:[%s0] sm:$0xff]
  %v27 = vld [vmem:[%s0 + $0x8] sm:$0xff]
  %v28 = vld [vmem:[%s0 + $0x10] sm:$0xff]
  %v29 = vld [vmem:[%s0 + $0x18] sm:$0xff]
  %v30 = vld [vmem:[%s0 + $0x20] sm:$0xff]
  %v31 = vld [vmem:[%s0 + $0x28] sm:$0xff]
  %v32 = vld [vmem:[%s1] sm:$0xff]
  %v33 = vld [vmem:[%s1 + $0x8] sm:$0xff]
  %v34 = vld [vmem:[%s1 + $0x10] sm:$0xff]
  %v35 = vld [vmem:[%s1 + $0x18] sm:$0xff]
  %v36 = vld [vmem:[%s1 + $0x20] sm:$0xff]
  %v37 = vld [vmem:[%s1 + $0x28] sm:$0xff]
  %v38 = vpack.c.bf16 %v26, %v26
  %v39 = vpack.c.bf16 %v27, %v27
  %v40 = vpack.c.bf16 %v28, %v28
  %v41 = vpack.c.bf16 %v29, %v29
  %v42 = vpack.c.bf16 %v30, %v30
  %v43 = vpack.c.bf16 %v31, %v31
  %v44 = vld [vmem:[%s2] sm:$0xf]
  %v45 = vld [vmem:[%s2 + $0x4] sm:$0xf]
  %v46 = vld [vmem:[%s2 + $0x8] sm:$0xf]
  %v47 = vld [vmem:[%s2 + $0xc] sm:$0xf]
  %v48 = vld [vmem:[%s2 + $0x10] sm:$0xf]
  %v49 = vld [vmem:[%s2 + $0x14] sm:$0xf]
  %v50 = vld [vmem:[%s2 + $0x18] sm:$0xf]
  %v51 = vld [vmem:[%s2 + $0x1c] sm:$0xf]
  %v52 = vld [vmem:[%s2 + $0x20] sm:$0xf]
  %v53 = vld [vmem:[%s2 + $0x24] sm:$0xf]
  %v54 = vld [vmem:[%s2 + $0x28] sm:$0xf]
  %v55 = vld [vmem:[%s2 + $0x2c] sm:$0xf]
  %v56 = vld [vmem:[%s2 + $0x30] sm:$0xf]
  %v57 = vld [vmem:[%s2 + $0x34] sm:$0xf]
  %v58 = vld [vmem:[%s2 + $0x38] sm:$0xf]
  %v59 = vld [vmem:[%s2 + $0x3c] sm:$0xf]
  %v60 = vld [vmem:[%s2 + $0x40] sm:$0xf]
  %v61 = vld [vmem:[%s2 + $0x44] sm:$0xf]
  %v62 = vld [vmem:[%s2 + $0x48] sm:$0xf]
  %v63 = vld [vmem:[%s2 + $0x4c] sm:$0xf]
  %v64 = vld [vmem:[%s2 + $0x50] sm:$0xf]
  %v65 = vld [vmem:[%s2 + $0x54] sm:$0xf]
  %v66 = vld [vmem:[%s2 + $0x58] sm:$0xf]
  %v67 = vld [vmem:[%s2 + $0x5c] sm:$0xf]
  %v68 = vld [vmem:[%s2 + $0x60] sm:$0xf]
  %v69 = vld [vmem:[%s2 + $0x64] sm:$0xf]
  %v70 = vld [vmem:[%s2 + $0x68] sm:$0xf]
  %v71 = vld [vmem:[%s2 + $0x6c] sm:$0xf]
  %v72 = vld [vmem:[%s2 + $0x70] sm:$0xf]
  %v73 = vld [vmem:[%s2 + $0x74] sm:$0xf]
  %v74 = vld [vmem:[%s2 + $0x78] sm:$0xf]
  %v75 = vld [vmem:[%s2 + $0x7c] sm:$0xf]
  %v76 = vld [vmem:[%s2 + $0x80] sm:$0xf]
  %v77 = vld [vmem:[%s2 + $0x84] sm:$0xf]
  %v78 = vld [vmem:[%s2 + $0x88] sm:$0xf]
  %v79 = vld [vmem:[%s2 + $0x8c] sm:$0xf]
  %v80 = vld [vmem:[%s2 + $0x90] sm:$0xf]
  %v81 = vld [vmem:[%s2 + $0x94] sm:$0xf]
  %v82 = vld [vmem:[%s2 + $0x98] sm:$0xf]
  %v83 = vld [vmem:[%s2 + $0x9c] sm:$0xf]
  %v84 = vld [vmem:[%s2 + $0xa0] sm:$0xf]
  %v85 = vld [vmem:[%s2 + $0xa4] sm:$0xf]
  %v86 = vld [vmem:[%s2 + $0xa8] sm:$0xf]
  %v87 = vld [vmem:[%s2 + $0xac] sm:$0xf]
  %v88 = vld [vmem:[%s2 + $0xb0] sm:$0xf]
  %v89 = vld [vmem:[%s2 + $0xb4] sm:$0xf]
  %v90 = vld [vmem:[%s2 + $0xb8] sm:$0xf]
  %v91 = vld [vmem:[%s2 + $0xbc] sm:$0xf]
  %v92 = vld [vmem:[%s2 + $0xc0] sm:$0xf]
  %v93 = vld [vmem:[%s2 + $0xc4] sm:$0xf]
  %v94 = vld [vmem:[%s2 + $0xc8] sm:$0xf]
  %v95 = vld [vmem:[%s2 + $0xcc] sm:$0xf]
  %v96 = vld [vmem:[%s2 + $0xd0] sm:$0xf]
  %v97 = vld [vmem:[%s2 + $0xd4] sm:$0xf]
  %v98 = vld [vmem:[%s2 + $0xd8] sm:$0xf]
  %v99 = vld [vmem:[%s2 + $0xdc] sm:$0xf]
  %v100 = vld [vmem:[%s2 + $0xe0] sm:$0xf]
  %v101 = vld [vmem:[%s2 + $0xe4] sm:$0xf]
  %v102 = vld [vmem:[%s2 + $0xe8] sm:$0xf]
  %v103 = vld [vmem:[%s2 + $0xec] sm:$0xf]
  %v104 = vld [vmem:[%s2 + $0xf0] sm:$0xf]
  %v105 = vld [vmem:[%s2 + $0xf4] sm:$0xf]
  %v106 = vld [vmem:[%s2 + $0xf8] sm:$0xf]
  %v107 = vld [vmem:[%s2 + $0xfc] sm:$0xf]
  %v108 = vld [vmem:[%s2 + $0x100] sm:$0xf]
  %v109 = vld [vmem:[%s2 + $0x104] sm:$0xf]
  %v110 = vld [vmem:[%s2 + $0x108] sm:$0xf]
  %v111 = vld [vmem:[%s2 + $0x10c] sm:$0xf]
  %v112 = vld [vmem:[%s2 + $0x110] sm:$0xf]
  %v113 = vld [vmem:[%s2 + $0x114] sm:$0xf]
  %v114 = vld [vmem:[%s2 + $0x118] sm:$0xf]
  %v115 = vld [vmem:[%s2 + $0x11c] sm:$0xf]
  %v116 = vld [vmem:[%s2 + $0x120] sm:$0xf]
  %v117 = vld [vmem:[%s2 + $0x124] sm:$0xf]
  %v118 = vld [vmem:[%s2 + $0x128] sm:$0xf]
  %v119 = vld [vmem:[%s2 + $0x12c] sm:$0xf]
  %v120 = vld [vmem:[%s2 + $0x130] sm:$0xf]
  %v121 = vld [vmem:[%s2 + $0x134] sm:$0xf]
  %v122 = vld [vmem:[%s2 + $0x138] sm:$0xf]
  %v123 = vld [vmem:[%s2 + $0x13c] sm:$0xf]
  %v124 = vld [vmem:[%s2 + $0x140] sm:$0xf]
  %v125 = vld [vmem:[%s2 + $0x144] sm:$0xf]
  %v126 = vld [vmem:[%s2 + $0x148] sm:$0xf]
  %v127 = vld [vmem:[%s2 + $0x14c] sm:$0xf]
  %v128 = vld [vmem:[%s2 + $0x150] sm:$0xf]
  %v129 = vld [vmem:[%s2 + $0x154] sm:$0xf]
  %v130 = vld [vmem:[%s2 + $0x158] sm:$0xf]
  %v131 = vld [vmem:[%s2 + $0x15c] sm:$0xf]
  %v132 = vld [vmem:[%s2 + $0x160] sm:$0xf]
  %v133 = vld [vmem:[%s2 + $0x164] sm:$0xf]
  %v134 = vld [vmem:[%s2 + $0x168] sm:$0xf]
  %v135 = vld [vmem:[%s2 + $0x16c] sm:$0xf]
  %v136 = vld [vmem:[%s2 + $0x170] sm:$0xf]
  %v137 = vld [vmem:[%s2 + $0x174] sm:$0xf]
  %v138 = vld [vmem:[%s2 + $0x178] sm:$0xf]
  %v139 = vld [vmem:[%s2 + $0x17c] sm:$0xf]
  %v140 = vld [vmem:[%s3] sm:$0x1]
  %v142 = vlaneseq
  %v143 = vshrl.u32 %v142, 7
  %v144 = vsub.s32 0, %v143
  %v145 = vrot.slane %v140, %v144
  %v243 = vunpack.c.l.b16 %v44
  %v244 = vunpack.c.l.b16 %v45
  %v245 = vunpack.c.l.b16 %v46
  %v246 = vunpack.c.l.b16 %v47
  %v247 = vunpack.c.l.b16 %v48
  %v248 = vunpack.c.l.b16 %v49
  %v249 = vunpack.c.l.b16 %v50
  %v250 = vunpack.c.l.b16 %v51
  %v251 = vunpack.c.l.b16 %v52
  %v252 = vunpack.c.l.b16 %v53
  %v253 = vunpack.c.l.b16 %v54
  %v254 = vunpack.c.l.b16 %v55
  %v255 = vunpack.c.l.b16 %v56
  %v256 = vunpack.c.l.b16 %v57
  %v257 = vunpack.c.l.b16 %v58
  %v258 = vunpack.c.l.b16 %v59
  %v259 = vunpack.c.l.b16 %v60
  %v260 = vunpack.c.l.b16 %v61
  %v261 = vunpack.c.l.b16 %v62
  %v262 = vunpack.c.l.b16 %v63
  %v263 = vunpack.c.l.b16 %v64
  %v264 = vunpack.c.l.b16 %v65
  %v265 = vunpack.c.l.b16 %v66
  %v266 = vunpack.c.l.b16 %v67
  %v267 = vunpack.c.l.b16 %v68
  %v268 = vunpack.c.l.b16 %v69
  %v269 = vunpack.c.l.b16 %v70
  %v270 = vunpack.c.l.b16 %v71
  %v271 = vunpack.c.l.b16 %v72
  %v272 = vunpack.c.l.b16 %v73
  %v273 = vunpack.c.l.b16 %v74
  %v274 = vunpack.c.l.b16 %v75
  %v275 = vunpack.c.l.b16 %v76
  %v276 = vunpack.c.l.b16 %v77
  %v277 = vunpack.c.l.b16 %v78
  %v278 = vunpack.c.l.b16 %v79
  %v279 = vunpack.c.l.b16 %v80
  %v280 = vunpack.c.l.b16 %v81
  %v281 = vunpack.c.l.b16 %v82
  %v282 = vunpack.c.l.b16 %v83
  %v283 = vunpack.c.l.b16 %v84
  %v284 = vunpack.c.l.b16 %v85
  %v285 = vunpack.c.l.b16 %v86
  %v286 = vunpack.c.l.b16 %v87
  %v287 = vunpack.c.l.b16 %v88
  %v288 = vunpack.c.l.b16 %v89
  %v289 = vunpack.c.l.b16 %v90
  %v290 = vunpack.c.l.b16 %v91
  %v291 = vunpack.c.l.b16 %v92
  %v292 = vunpack.c.l.b16 %v93
  %v293 = vunpack.c.l.b16 %v94
  %v294 = vunpack.c.l.b16 %v95
  %v295 = vunpack.c.l.b16 %v96
  %v296 = vunpack.c.l.b16 %v97
  %v297 = vunpack.c.l.b16 %v98
  %v298 = vunpack.c.l.b16 %v99
  %v299 = vunpack.c.l.b16 %v100
  %v300 = vunpack.c.l.b16 %v101
  %v301 = vunpack.c.l.b16 %v102
  %v302 = vunpack.c.l.b16 %v103
  %v303 = vunpack.c.l.b16 %v104
  %v304 = vunpack.c.l.b16 %v105
  %v305 = vunpack.c.l.b16 %v106
  %v306 = vunpack.c.l.b16 %v107
  %v307 = vunpack.c.l.b16 %v108
  %v308 = vunpack.c.l.b16 %v109
  %v309 = vunpack.c.l.b16 %v110
  %v310 = vunpack.c.l.b16 %v111
  %v311 = vunpack.c.l.b16 %v112
  %v312 = vunpack.c.l.b16 %v113
  %v313 = vunpack.c.l.b16 %v114
  %v314 = vunpack.c.l.b16 %v115
  %v315 = vunpack.c.l.b16 %v116
  %v316 = vunpack.c.l.b16 %v117
  %v317 = vunpack.c.l.b16 %v118
  %v318 = vunpack.c.l.b16 %v119
  %v319 = vunpack.c.l.b16 %v120
  %v320 = vunpack.c.l.b16 %v121
  %v321 = vunpack.c.l.b16 %v122
  %v322 = vunpack.c.l.b16 %v123
  %v323 = vunpack.c.l.b16 %v124
  %v324 = vunpack.c.l.b16 %v125
  %v325 = vunpack.c.l.b16 %v126
  %v326 = vunpack.c.l.b16 %v127
  %v327 = vunpack.c.l.b16 %v128
  %v328 = vunpack.c.l.b16 %v129
  %v329 = vunpack.c.l.b16 %v130
  %v330 = vunpack.c.l.b16 %v131
  %v331 = vunpack.c.l.b16 %v132
  %v332 = vunpack.c.l.b16 %v133
  %v333 = vunpack.c.l.b16 %v134
  %v334 = vunpack.c.l.b16 %v135
  %v335 = vunpack.c.l.b16 %v136
  %v336 = vunpack.c.l.b16 %v137
  %v337 = vunpack.c.l.b16 %v138
  %v338 = vunpack.c.l.b16 %v139
  %v339 = vpack.c.b16 %v244, %v243
  %v340 = vpack.c.b16 %v246, %v245
  %v341 = vpack.c.b16 %v248, %v247
  %v342 = vpack.c.b16 %v250, %v249
  %v343 = vpack.c.b16 %v252, %v251
  %v344 = vpack.c.b16 %v254, %v253
  %v345 = vpack.c.b16 %v256, %v255
  %v346 = vpack.c.b16 %v258, %v257
  %v347 = vpack.c.b16 %v260, %v259
  %v348 = vpack.c.b16 %v262, %v261
  %v349 = vpack.c.b16 %v264, %v263
  %v350 = vpack.c.b16 %v266, %v265
  %v351 = vpack.c.b16 %v268, %v267
  %v352 = vpack.c.b16 %v270, %v269
  %v353 = vpack.c.b16 %v272, %v271
  %v354 = vpack.c.b16 %v274, %v273
  %v355 = vpack.c.b16 %v276, %v275
  %v356 = vpack.c.b16 %v278, %v277
  %v357 = vpack.c.b16 %v280, %v279
  %v358 = vpack.c.b16 %v282, %v281
  %v359 = vpack.c.b16 %v284, %v283
  %v360 = vpack.c.b16 %v286, %v285
  %v361 = vpack.c.b16 %v288, %v287
  %v362 = vpack.c.b16 %v290, %v289
  %v363 = vpack.c.b16 %v292, %v291
  %v364 = vpack.c.b16 %v294, %v293
  %v365 = vpack.c.b16 %v296, %v295
  %v366 = vpack.c.b16 %v298, %v297
  %v367 = vpack.c.b16 %v300, %v299
  %v368 = vpack.c.b16 %v302, %v301
  %v369 = vpack.c.b16 %v304, %v303
  %v370 = vpack.c.b16 %v306, %v305
  %v371 = vpack.c.b16 %v308, %v307
  %v372 = vpack.c.b16 %v310, %v309
  %v373 = vpack.c.b16 %v312, %v311
  %v374 = vpack.c.b16 %v314, %v313
  %v375 = vpack.c.b16 %v316, %v315
  %v376 = vpack.c.b16 %v318, %v317
  %v377 = vpack.c.b16 %v320, %v319
  %v378 = vpack.c.b16 %v322, %v321
  %v379 = vpack.c.b16 %v324, %v323
  %v380 = vpack.c.b16 %v326, %v325
  %v381 = vpack.c.b16 %v328, %v327
  %v382 = vpack.c.b16 %v330, %v329
  %v383 = vpack.c.b16 %v332, %v331
  %v384 = vpack.c.b16 %v334, %v333
  %v385 = vpack.c.b16 %v336, %v335
  %v386 = vpack.c.b16 %v338, %v337
  %435 = vmatprep.subr.bf16.mxu0 0
  %436 = vmatpush1.bf16.msra.mxu0 %v346
  %437 = vmatprep.subr.bf16.mxu0 0
  %438 = vmatpush1.bf16.msra.mxu0 %v345
  %439 = vmatprep.subr.bf16.mxu0 0
  %440 = vmatpush1.bf16.msra.mxu0 %v344
  %441 = vmatprep.subr.bf16.mxu0 0
  %442 = vmatpush1.bf16.msra.mxu0 %v343
  %443 = vmatprep.subr.bf16.mxu0 0
  %444 = vmatpush1.bf16.msra.mxu0 %v342
  %445 = vmatprep.subr.bf16.mxu0 0
  %446 = vmatpush1.bf16.msra.mxu0 %v341
  %447 = vmatprep.subr.bf16.mxu0 0
  %448 = vmatpush1.bf16.msra.mxu0 %v340
  %449 = vmatprep.subr.bf16.mxu0 0
  %450 = vmatpush1.bf16.msra.mxu0 %v339
  %451 = vmatprep.subr.bf16.mxu0 0
  %452 = vmatpush2.bf16.msra.mxu0 %v354
  %453 = vmatprep.subr.bf16.mxu0 0
  %454 = vmatpush2.bf16.msra.mxu0 %v353
  %455 = vmatprep.subr.bf16.mxu0 0
  %456 = vmatpush2.bf16.msra.mxu0 %v352
  %457 = vmatprep.subr.bf16.mxu0 0
  %458 = vmatpush2.bf16.msra.mxu0 %v351
  %459 = vmatprep.subr.bf16.mxu0 0
  %460 = vmatpush2.bf16.msra.mxu0 %v350
  %461 = vmatprep.subr.bf16.mxu0 0
  %462 = vmatpush2.bf16.msra.mxu0 %v349
  %463 = vmatprep.subr.bf16.mxu0 0
  %464 = vmatpush2.bf16.msra.mxu0 %v348
  %465 = vmatprep.subr.bf16.mxu0 0
  %466 = vmatpush2.bf16.msra.mxu0 %v347
  %467 = vmatprep.mubr.bf16.mxu0 %v39
  %468 = vmatmul.mubr.bf16.gmra.mxu0 %v38
  %v469 = vpop.f32.mrf.mxu0
  %v470 = vadd.f32 %v145, %v469
  %v471 = vpop.f32.mrf.mxu0
  %v472 = vpop.f32.mrf.mxu0
  %v473 = vpop.f32.mrf.mxu0
  %474 = vdwg.mxu0
  %475 = vmatprep.subr.bf16.mxu0 0
  %476 = vmatpush1.bf16.msra.mxu0 %v362
  %477 = vmatprep.subr.bf16.mxu0 0
  %478 = vmatpush1.bf16.msra.mxu0 %v361
  %479 = vmatprep.subr.bf16.mxu0 0
  %480 = vmatpush1.bf16.msra.mxu0 %v360
  %481 = vmatprep.subr.bf16.mxu0 0
  %482 = vmatpush1.bf16.msra.mxu0 %v359
  %483 = vmatprep.subr.bf16.mxu0 0
  %484 = vmatpush1.bf16.msra.mxu0 %v358
  %485 = vmatprep.subr.bf16.mxu0 0
  %486 = vmatpush1.bf16.msra.mxu0 %v357
  %487 = vmatprep.subr.bf16.mxu0 0
  %488 = vmatpush1.bf16.msra.mxu0 %v356
  %489 = vmatprep.subr.bf16.mxu0 0
  %490 = vmatpush1.bf16.msra.mxu0 %v355
  %491 = vmatprep.subr.bf16.mxu0 0
  %492 = vmatpush2.bf16.msra.mxu0 %v370
  %493 = vmatprep.subr.bf16.mxu0 0
  %494 = vmatpush2.bf16.msra.mxu0 %v369
  %495 = vmatprep.subr.bf16.mxu0 0
  %496 = vmatpush2.bf16.msra.mxu0 %v368
  %497 = vmatprep.subr.bf16.mxu0 0
  %498 = vmatpush2.bf16.msra.mxu0 %v367
  %499 = vmatprep.subr.bf16.mxu0 0
  %500 = vmatpush2.bf16.msra.mxu0 %v366
  %501 = vmatprep.subr.bf16.mxu0 0
  %502 = vmatpush2.bf16.msra.mxu0 %v365
  %503 = vmatprep.subr.bf16.mxu0 0
  %504 = vmatpush2.bf16.msra.mxu0 %v364
  %505 = vmatprep.subr.bf16.mxu0 0
  %506 = vmatpush2.bf16.msra.mxu0 %v363
  %507 = vmatprep.mubr.bf16.mxu0 %v41
  %508 = vmatmul.mubr.bf16.gmra.mxu0 %v40
  %v509 = vpop.f32.mrf.mxu0
  %v510 = vadd.f32 %v470, %v509
  %v511 = vpop.f32.mrf.mxu0
  %v512 = vpop.f32.mrf.mxu0
  %v513 = vpop.f32.mrf.mxu0
  %514 = vdwg.mxu0
  %515 = vmatprep.subr.bf16.mxu0 0
  %516 = vmatpush1.bf16.msra.mxu0 %v378
  %517 = vmatprep.subr.bf16.mxu0 0
  %518 = vmatpush1.bf16.msra.mxu0 %v377
  %519 = vmatprep.subr.bf16.mxu0 0
  %520 = vmatpush1.bf16.msra.mxu0 %v376
  %521 = vmatprep.subr.bf16.mxu0 0
  %522 = vmatpush1.bf16.msra.mxu0 %v375
  %523 = vmatprep.subr.bf16.mxu0 0
  %524 = vmatpush1.bf16.msra.mxu0 %v374
  %525 = vmatprep.subr.bf16.mxu0 0
  %526 = vmatpush1.bf16.msra.mxu0 %v373
  %527 = vmatprep.subr.bf16.mxu0 0
  %528 = vmatpush1.bf16.msra.mxu0 %v372
  %529 = vmatprep.subr.bf16.mxu0 0
  %530 = vmatpush1.bf16.msra.mxu0 %v371
  %531 = vmatprep.subr.bf16.mxu0 0
  %532 = vmatpush2.bf16.msra.mxu0 %v386
  %533 = vmatprep.subr.bf16.mxu0 0
  %534 = vmatpush2.bf16.msra.mxu0 %v385
  %535 = vmatprep.subr.bf16.mxu0 0
  %536 = vmatpush2.bf16.msra.mxu0 %v384
  %537 = vmatprep.subr.bf16.mxu0 0
  %538 = vmatpush2.bf16.msra.mxu0 %v383
  %539 = vmatprep.subr.bf16.mxu0 0
  %540 = vmatpush2.bf16.msra.mxu0 %v382
  %541 = vmatprep.subr.bf16.mxu0 0
  %542 = vmatpush2.bf16.msra.mxu0 %v381
  %543 = vmatprep.subr.bf16.mxu0 0
  %544 = vmatpush2.bf16.msra.mxu0 %v380
  %545 = vmatprep.subr.bf16.mxu0 0
  %546 = vmatpush2.bf16.msra.mxu0 %v379
  %547 = vmatprep.mubr.bf16.mxu0 %v43
  %548 = vmatmul.mubr.bf16.gmra.mxu0 %v42
  %v549 = vpop.f32.mrf.mxu0
  %v550 = vadd.f32 %v510, %v549
  %v551 = vpop.f32.mrf.mxu0
  %v552 = vpop.f32.mrf.mxu0
  %v553 = vpop.f32.mrf.mxu0
  %554 = vdwg.mxu0
  %v555 = vpack.c.bf16 %v32, %v32
  %v556 = vpack.c.bf16 %v33, %v33
  %v557 = vpack.c.bf16 %v34, %v34
  %v558 = vpack.c.bf16 %v35, %v35
  %v559 = vpack.c.bf16 %v36, %v36
  %v560 = vpack.c.bf16 %v37, %v37
  %v561 = vld [vmem:[%s4] sm:$0xf]
  %v562 = vld [vmem:[%s4 + $0x4] sm:$0xf]
  %v563 = vld [vmem:[%s4 + $0x8] sm:$0xf]
  %v564 = vld [vmem:[%s4 + $0xc] sm:$0xf]
  %v565 = vld [vmem:[%s4 + $0x10] sm:$0xf]
  %v566 = vld [vmem:[%s4 + $0x14] sm:$0xf]
  %v567 = vld [vmem:[%s4 + $0x18] sm:$0xf]
  %v568 = vld [vmem:[%s4 + $0x1c] sm:$0xf]
  %v569 = vld [vmem:[%s4 + $0x20] sm:$0xf]
  %v570 = vld [vmem:[%s4 + $0x24] sm:$0xf]
  %v571 = vld [vmem:[%s4 + $0x28] sm:$0xf]
  %v572 = vld [vmem:[%s4 + $0x2c] sm:$0xf]
  %v573 = vld [vmem:[%s4 + $0x30] sm:$0xf]
  %v574 = vld [vmem:[%s4 + $0x34] sm:$0xf]
  %v575 = vld [vmem:[%s4 + $0x38] sm:$0xf]
  %v576 = vld [vmem:[%s4 + $0x3c] sm:$0xf]
  %v577 = vld [vmem:[%s4 + $0x40] sm:$0xf]
  %v578 = vld [vmem:[%s4 + $0x44] sm:$0xf]
  %v579 = vld [vmem:[%s4 + $0x48] sm:$0xf]
  %v580 = vld [vmem:[%s4 + $0x4c] sm:$0xf]
  %v581 = vld [vmem:[%s4 + $0x50] sm:$0xf]
  %v582 = vld [vmem:[%s4 + $0x54] sm:$0xf]
  %v583 = vld [vmem:[%s4 + $0x58] sm:$0xf]
  %v584 = vld [vmem:[%s4 + $0x5c] sm:$0xf]
  %v585 = vld [vmem:[%s4 + $0x60] sm:$0xf]
  %v586 = vld [vmem:[%s4 + $0x64] sm:$0xf]
  %v587 = vld [vmem:[%s4 + $0x68] sm:$0xf]
  %v588 = vld [vmem:[%s4 + $0x6c] sm:$0xf]
  %v589 = vld [vmem:[%s4 + $0x70] sm:$0xf]
  %v590 = vld [vmem:[%s4 + $0x74] sm:$0xf]
  %v591 = vld [vmem:[%s4 + $0x78] sm:$0xf]
  %v592 = vld [vmem:[%s4 + $0x7c] sm:$0xf]
  %v593 = vld [vmem:[%s4 + $0x80] sm:$0xf]
  %v594 = vld [vmem:[%s4 + $0x84] sm:$0xf]
  %v595 = vld [vmem:[%s4 + $0x88] sm:$0xf]
  %v596 = vld [vmem:[%s4 + $0x8c] sm:$0xf]
  %v597 = vld [vmem:[%s4 + $0x90] sm:$0xf]
  %v598 = vld [vmem:[%s4 + $0x94] sm:$0xf]
  %v599 = vld [vmem:[%s4 + $0x98] sm:$0xf]
  %v600 = vld [vmem:[%s4 + $0x9c] sm:$0xf]
  %v601 = vld [vmem:[%s4 + $0xa0] sm:$0xf]
  %v602 = vld [vmem:[%s4 + $0xa4] sm:$0xf]
  %v603 = vld [vmem:[%s4 + $0xa8] sm:$0xf]
  %v604 = vld [vmem:[%s4 + $0xac] sm:$0xf]
  %v605 = vld [vmem:[%s4 + $0xb0] sm:$0xf]
  %v606 = vld [vmem:[%s4 + $0xb4] sm:$0xf]
  %v607 = vld [vmem:[%s4 + $0xb8] sm:$0xf]
  %v608 = vld [vmem:[%s4 + $0xbc] sm:$0xf]
  %v609 = vld [vmem:[%s4 + $0xc0] sm:$0xf]
  %v610 = vld [vmem:[%s4 + $0xc4] sm:$0xf]
  %v611 = vld [vmem:[%s4 + $0xc8] sm:$0xf]
  %v612 = vld [vmem:[%s4 + $0xcc] sm:$0xf]
  %v613 = vld [vmem:[%s4 + $0xd0] sm:$0xf]
  %v614 = vld [vmem:[%s4 + $0xd4] sm:$0xf]
  %v615 = vld [vmem:[%s4 + $0xd8] sm:$0xf]
  %v616 = vld [vmem:[%s4 + $0xdc] sm:$0xf]
  %v617 = vld [vmem:[%s4 + $0xe0] sm:$0xf]
  %v618 = vld [vmem:[%s4 + $0xe4] sm:$0xf]
  %v619 = vld [vmem:[%s4 + $0xe8] sm:$0xf]
  %v620 = vld [vmem:[%s4 + $0xec] sm:$0xf]
  %v621 = vld [vmem:[%s4 + $0xf0] sm:$0xf]
  %v622 = vld [vmem:[%s4 + $0xf4] sm:$0xf]
  %v623 = vld [vmem:[%s4 + $0xf8] sm:$0xf]
  %v624 = vld [vmem:[%s4 + $0xfc] sm:$0xf]
  %v625 = vld [vmem:[%s4 + $0x100] sm:$0xf]
  %v626 = vld [vmem:[%s4 + $0x104] sm:$0xf]
  %v627 = vld [vmem:[%s4 + $0x108] sm:$0xf]
  %v628 = vld [vmem:[%s4 + $0x10c] sm:$0xf]
  %v629 = vld [vmem:[%s4 + $0x110] sm:$0xf]
  %v630 = vld [vmem:[%s4 + $0x114] sm:$0xf]
  %v631 = vld [vmem:[%s4 + $0x118] sm:$0xf]
  %v632 = vld [vmem:[%s4 + $0x11c] sm:$0xf]
  %v633 = vld [vmem:[%s4 + $0x120] sm:$0xf]
  %v634 = vld [vmem:[%s4 + $0x124] sm:$0xf]
  %v635 = vld [vmem:[%s4 + $0x128] sm:$0xf]
  %v636 = vld [vmem:[%s4 + $0x12c] sm:$0xf]
  %v637 = vld [vmem:[%s4 + $0x130] sm:$0xf]
  %v638 = vld [vmem:[%s4 + $0x134] sm:$0xf]
  %v639 = vld [vmem:[%s4 + $0x138] sm:$0xf]
  %v640 = vld [vmem:[%s4 + $0x13c] sm:$0xf]
  %v641 = vld [vmem:[%s4 + $0x140] sm:$0xf]
  %v642 = vld [vmem:[%s4 + $0x144] sm:$0xf]
  %v643 = vld [vmem:[%s4 + $0x148] sm:$0xf]
  %v644 = vld [vmem:[%s4 + $0x14c] sm:$0xf]
  %v645 = vld [vmem:[%s4 + $0x150] sm:$0xf]
  %v646 = vld [vmem:[%s4 + $0x154] sm:$0xf]
  %v647 = vld [vmem:[%s4 + $0x158] sm:$0xf]
  %v648 = vld [vmem:[%s4 + $0x15c] sm:$0xf]
  %v649 = vld [vmem:[%s4 + $0x160] sm:$0xf]
  %v650 = vld [vmem:[%s4 + $0x164] sm:$0xf]
  %v651 = vld [vmem:[%s4 + $0x168] sm:$0xf]
  %v652 = vld [vmem:[%s4 + $0x16c] sm:$0xf]
  %v653 = vld [vmem:[%s4 + $0x170] sm:$0xf]
  %v654 = vld [vmem:[%s4 + $0x174] sm:$0xf]
  %v655 = vld [vmem:[%s4 + $0x178] sm:$0xf]
  %v656 = vld [vmem:[%s4 + $0x17c] sm:$0xf]
  %v657 = vld [vmem:[%s5] sm:$0x1]
  %v659 = vlaneseq
  %v660 = vshrl.u32 %v659, 7
  %v661 = vsub.s32 0, %v660
  %v662 = vrot.slane %v657, %v661
  %v760 = vunpack.c.l.b16 %v561
  %v761 = vunpack.c.l.b16 %v562
  %v762 = vunpack.c.l.b16 %v563
  %v763 = vunpack.c.l.b16 %v564
  %v764 = vunpack.c.l.b16 %v565
  %v765 = vunpack.c.l.b16 %v566
  %v766 = vunpack.c.l.b16 %v567
  %v767 = vunpack.c.l.b16 %v568
  %v768 = vunpack.c.l.b16 %v569
  %v769 = vunpack.c.l.b16 %v570
  %v770 = vunpack.c.l.b16 %v571
  %v771 = vunpack.c.l.b16 %v572
  %v772 = vunpack.c.l.b16 %v573
  %v773 = vunpack.c.l.b16 %v574
  %v774 = vunpack.c.l.b16 %v575
  %v775 = vunpack.c.l.b16 %v576
  %v776 = vunpack.c.l.b16 %v577
  %v777 = vunpack.c.l.b16 %v578
  %v778 = vunpack.c.l.b16 %v579
  %v779 = vunpack.c.l.b16 %v580
  %v780 = vunpack.c.l.b16 %v581
  %v781 = vunpack.c.l.b16 %v582
  %v782 = vunpack.c.l.b16 %v583
  %v783 = vunpack.c.l.b16 %v584
  %v784 = vunpack.c.l.b16 %v585
  %v785 = vunpack.c.l.b16 %v586
  %v786 = vunpack.c.l.b16 %v587
  %v787 = vunpack.c.l.b16 %v588
  %v788 = vunpack.c.l.b16 %v589
  %v789 = vunpack.c.l.b16 %v590
  %v790 = vunpack.c.l.b16 %v591
  %v791 = vunpack.c.l.b16 %v592
  %v792 = vunpack.c.l.b16 %v593
  %v793 = vunpack.c.l.b16 %v594
  %v794 = vunpack.c.l.b16 %v595
  %v795 = vunpack.c.l.b16 %v596
  %v796 = vunpack.c.l.b16 %v597
  %v797 = vunpack.c.l.b16 %v598
  %v798 = vunpack.c.l.b16 %v599
  %v799 = vunpack.c.l.b16 %v600
  %v800 = vunpack.c.l.b16 %v601
  %v801 = vunpack.c.l.b16 %v602
  %v802 = vunpack.c.l.b16 %v603
  %v803 = vunpack.c.l.b16 %v604
  %v804 = vunpack.c.l.b16 %v605
  %v805 = vunpack.c.l.b16 %v606
  %v806 = vunpack.c.l.b16 %v607
  %v807 = vunpack.c.l.b16 %v608
  %v808 = vunpack.c.l.b16 %v609
  %v809 = vunpack.c.l.b16 %v610
  %v810 = vunpack.c.l.b16 %v611
  %v811 = vunpack.c.l.b16 %v612
  %v812 = vunpack.c.l.b16 %v613
  %v813 = vunpack.c.l.b16 %v614
  %v814 = vunpack.c.l.b16 %v615
  %v815 = vunpack.c.l.b16 %v616
  %v816 = vunpack.c.l.b16 %v617
  %v817 = vunpack.c.l.b16 %v618
  %v818 = vunpack.c.l.b16 %v619
  %v819 = vunpack.c.l.b16 %v620
  %v820 = vunpack.c.l.b16 %v621
  %v821 = vunpack.c.l.b16 %v622
  %v822 = vunpack.c.l.b16 %v623
  %v823 = vunpack.c.l.b16 %v624
  %v824 = vunpack.c.l.b16 %v625
  %v825 = vunpack.c.l.b16 %v626
  %v826 = vunpack.c.l.b16 %v627
  %v827 = vunpack.c.l.b16 %v628
  %v828 = vunpack.c.l.b16 %v629
  %v829 = vunpack.c.l.b16 %v630
  %v830 = vunpack.c.l.b16 %v631
  %v831 = vunpack.c.l.b16 %v632
  %v832 = vunpack.c.l.b16 %v633
  %v833 = vunpack.c.l.b16 %v634
  %v834 = vunpack.c.l.b16 %v635
  %v835 = vunpack.c.l.b16 %v636
  %v836 = vunpack.c.l.b16 %v637
  %v837 = vunpack.c.l.b16 %v638
  %v838 = vunpack.c.l.b16 %v639
  %v839 = vunpack.c.l.b16 %v640
  %v840 = vunpack.c.l.b16 %v641
  %v841 = vunpack.c.l.b16 %v642
  %v842 = vunpack.c.l.b16 %v643
  %v843 = vunpack.c.l.b16 %v644
  %v844 = vunpack.c.l.b16 %v645
  %v845 = vunpack.c.l.b16 %v646
  %v846 = vunpack.c.l.b16 %v647
  %v847 = vunpack.c.l.b16 %v648
  %v848 = vunpack.c.l.b16 %v649
  %v849 = vunpack.c.l.b16 %v650
  %v850 = vunpack.c.l.b16 %v651
  %v851 = vunpack.c.l.b16 %v652
  %v852 = vunpack.c.l.b16 %v653
  %v853 = vunpack.c.l.b16 %v654
  %v854 = vunpack.c.l.b16 %v655
  %v855 = vunpack.c.l.b16 %v656
  %v856 = vpack.c.b16 %v761, %v760
  %v857 = vpack.c.b16 %v763, %v762
  %v858 = vpack.c.b16 %v765, %v764
  %v859 = vpack.c.b16 %v767, %v766
  %v860 = vpack.c.b16 %v769, %v768
  %v861 = vpack.c.b16 %v771, %v770
  %v862 = vpack.c.b16 %v773, %v772
  %v863 = vpack.c.b16 %v775, %v774
  %v864 = vpack.c.b16 %v777, %v776
  %v865 = vpack.c.b16 %v779, %v778
  %v866 = vpack.c.b16 %v781, %v780
  %v867 = vpack.c.b16 %v783, %v782
  %v868 = vpack.c.b16 %v785, %v784
  %v869 = vpack.c.b16 %v787, %v786
  %v870 = vpack.c.b16 %v789, %v788
  %v871 = vpack.c.b16 %v791, %v790
  %v872 = vpack.c.b16 %v793, %v792
  %v873 = vpack.c.b16 %v795, %v794
  %v874 = vpack.c.b16 %v797, %v796
  %v875 = vpack.c.b16 %v799, %v798
  %v876 = vpack.c.b16 %v801, %v800
  %v877 = vpack.c.b16 %v803, %v802
  %v878 = vpack.c.b16 %v805, %v804
  %v879 = vpack.c.b16 %v807, %v806
  %v880 = vpack.c.b16 %v809, %v808
  %v881 = vpack.c.b16 %v811, %v810
  %v882 = vpack.c.b16 %v813, %v812
  %v883 = vpack.c.b16 %v815, %v814
  %v884 = vpack.c.b16 %v817, %v816
  %v885 = vpack.c.b16 %v819, %v818
  %v886 = vpack.c.b16 %v821, %v820
  %v887 = vpack.c.b16 %v823, %v822
  %v888 = vpack.c.b16 %v825, %v824
  %v889 = vpack.c.b16 %v827, %v826
  %v890 = vpack.c.b16 %v829, %v828
  %v891 = vpack.c.b16 %v831, %v830
  %v892 = vpack.c.b16 %v833, %v832
  %v893 = vpack.c.b16 %v835, %v834
  %v894 = vpack.c.b16 %v837, %v836
  %v895 = vpack.c.b16 %v839, %v838
  %v896 = vpack.c.b16 %v841, %v840
  %v897 = vpack.c.b16 %v843, %v842
  %v898 = vpack.c.b16 %v845, %v844
  %v899 = vpack.c.b16 %v847, %v846
  %v900 = vpack.c.b16 %v849, %v848
  %v901 = vpack.c.b16 %v851, %v850
  %v902 = vpack.c.b16 %v853, %v852
  %v903 = vpack.c.b16 %v855, %v854
  %952 = vmatprep.subr.bf16.mxu0 0
  %953 = vmatpush1.bf16.msra.mxu0 %v863
  %954 = vmatprep.subr.bf16.mxu0 0
  %955 = vmatpush1.bf16.msra.mxu0 %v862
  %956 = vmatprep.subr.bf16.mxu0 0
  %957 = vmatpush1.bf16.msra.mxu0 %v861
  %958 = vmatprep.subr.bf16.mxu0 0
  %959 = vmatpush1.bf16.msra.mxu0 %v860
  %960 = vmatprep.subr.bf16.mxu0 0
  %961 = vmatpush1.bf16.msra.mxu0 %v859
  %962 = vmatprep.subr.bf16.mxu0 0
  %963 = vmatpush1.bf16.msra.mxu0 %v858
  %964 = vmatprep.subr.bf16.mxu0 0
  %965 = vmatpush1.bf16.msra.mxu0 %v857
  %966 = vmatprep.subr.bf16.mxu0 0
  %967 = vmatpush1.bf16.msra.mxu0 %v856
  %968 = vmatprep.subr.bf16.mxu0 0
  %969 = vmatpush2.bf16.msra.mxu0 %v871
  %970 = vmatprep.subr.bf16.mxu0 0
  %971 = vmatpush2.bf16.msra.mxu0 %v870
  %972 = vmatprep.subr.bf16.mxu0 0
  %973 = vmatpush2.bf16.msra.mxu0 %v869
  %974 = vmatprep.subr.bf16.mxu0 0
  %975 = vmatpush2.bf16.msra.mxu0 %v868
  %976 = vmatprep.subr.bf16.mxu0 0
  %977 = vmatpush2.bf16.msra.mxu0 %v867
  %978 = vmatprep.subr.bf16.mxu0 0
  %979 = vmatpush2.bf16.msra.mxu0 %v866
  %980 = vmatprep.subr.bf16.mxu0 0
  %981 = vmatpush2.bf16.msra.mxu0 %v865
  %982 = vmatprep.subr.bf16.mxu0 0
  %983 = vmatpush2.bf16.msra.mxu0 %v864
  %984 = vmatprep.mubr.bf16.mxu0 %v556
  %985 = vmatmul.mubr.bf16.gmra.mxu0 %v555
  %v986 = vpop.f32.mrf.mxu0
  %v987 = vadd.f32 %v662, %v986
  %v988 = vpop.f32.mrf.mxu0
  %v989 = vpop.f32.mrf.mxu0
  %v990 = vpop.f32.mrf.mxu0
  %991 = vdwg.mxu0
  %992 = vmatprep.subr.bf16.mxu0 0
  %993 = vmatpush1.bf16.msra.mxu0 %v879
  %994 = vmatprep.subr.bf16.mxu0 0
  %995 = vmatpush1.bf16.msra.mxu0 %v878
  %996 = vmatprep.subr.bf16.mxu0 0
  %997 = vmatpush1.bf16.msra.mxu0 %v877
  %998 = vmatprep.subr.bf16.mxu0 0
  %999 = vmatpush1.bf16.msra.mxu0 %v876
  %1000 = vmatprep.subr.bf16.mxu0 0
  %1001 = vmatpush1.bf16.msra.mxu0 %v875
  %1002 = vmatprep.subr.bf16.mxu0 0
  %1003 = vmatpush1.bf16.msra.mxu0 %v874
  %1004 = vmatprep.subr.bf16.mxu0 0
  %1005 = vmatpush1.bf16.msra.mxu0 %v873
  %1006 = vmatprep.subr.bf16.mxu0 0
  %1007 = vmatpush1.bf16.msra.mxu0 %v872
  %1008 = vmatprep.subr.bf16.mxu0 0
  %1009 = vmatpush2.bf16.msra.mxu0 %v887
  %1010 = vmatprep.subr.bf16.mxu0 0
  %1011 = vmatpush2.bf16.msra.mxu0 %v886
  %1012 = vmatprep.subr.bf16.mxu0 0
  %1013 = vmatpush2.bf16.msra.mxu0 %v885
  %1014 = vmatprep.subr.bf16.mxu0 0
  %1015 = vmatpush2.bf16.msra.mxu0 %v884
  %1016 = vmatprep.subr.bf16.mxu0 0
  %1017 = vmatpush2.bf16.msra.mxu0 %v883
  %1018 = vmatprep.subr.bf16.mxu0 0
  %1019 = vmatpush2.bf16.msra.mxu0 %v882
  %1020 = vmatprep.subr.bf16.mxu0 0
  %1021 = vmatpush2.bf16.msra.mxu0 %v881
  %1022 = vmatprep.subr.bf16.mxu0 0
  %1023 = vmatpush2.bf16.msra.mxu0 %v880
  %1024 = vmatprep.mubr.bf16.mxu0 %v558
  %1025 = vmatmul.mubr.bf16.gmra.mxu0 %v557
  %v1026 = vpop.f32.mrf.mxu0
  %v1027 = vadd.f32 %v987, %v1026
  %v1028 = vpop.f32.mrf.mxu0
  %v1029 = vpop.f32.mrf.mxu0
  %v1030 = vpop.f32.mrf.mxu0
  %1031 = vdwg.mxu0
  %1032 = vmatprep.subr.bf16.mxu0 0
  %1033 = vmatpush1.bf16.msra.mxu0 %v895
  %1034 = vmatprep.subr.bf16.mxu0 0
  %1035 = vmatpush1.bf16.msra.mxu0 %v894
  %1036 = vmatprep.subr.bf16.mxu0 0
  %1037 = vmatpush1.bf16.msra.mxu0 %v893
  %1038 = vmatprep.subr.bf16.mxu0 0
  %1039 = vmatpush1.bf16.msra.mxu0 %v892
  %1040 = vmatprep.subr.bf16.mxu0 0
  %1041 = vmatpush1.bf16.msra.mxu0 %v891
  %1042 = vmatprep.subr.bf16.mxu0 0
  %1043 = vmatpush1.bf16.msra.mxu0 %v890
  %1044 = vmatprep.subr.bf16.mxu0 0
  %1045 = vmatpush1.bf16.msra.mxu0 %v889
  %1046 = vmatprep.subr.bf16.mxu0 0
  %1047 = vmatpush1.bf16.msra.mxu0 %v888
  %1048 = vmatprep.subr.bf16.mxu0 0
  %1049 = vmatpush2.bf16.msra.mxu0 %v903
  %1050 = vmatprep.subr.bf16.mxu0 0
  %1051 = vmatpush2.bf16.msra.mxu0 %v902
  %1052 = vmatprep.subr.bf16.mxu0 0
  %1053 = vmatpush2.bf16.msra.mxu0 %v901
  %1054 = vmatprep.subr.bf16.mxu0 0
  %1055 = vmatpush2.bf16.msra.mxu0 %v900
  %1056 = vmatprep.subr.bf16.mxu0 0
  %1057 = vmatpush2.bf16.msra.mxu0 %v899
  %1058 = vmatprep.subr.bf16.mxu0 0
  %1059 = vmatpush2.bf16.msra.mxu0 %v898
  %1060 = vmatprep.subr.bf16.mxu0 0
  %1061 = vmatpush2.bf16.msra.mxu0 %v897
  %1062 = vmatprep.subr.bf16.mxu0 0
  %1063 = vmatpush2.bf16.msra.mxu0 %v896
  %1064 = vmatprep.mubr.bf16.mxu0 %v560
  %1065 = vmatmul.mubr.bf16.gmra.mxu0 %v559
  %v1066 = vpop.f32.mrf.mxu0
  %v1067 = vadd.f32 %v1027, %v1066
  %v1068 = vpop.f32.mrf.mxu0
  %v1069 = vpop.f32.mrf.mxu0
  %v1070 = vpop.f32.mrf.mxu0
  %1071 = vdwg.mxu0
  %1073 = vrot.lane.b32.xlu0 %v1067, 16
  %v1074 = vpop.permute.xlu0 %1073
  %vm1076 = vcmask 130048
  %v1077 = vsel %vm1076, %v550, %v1074
  %vm1078 = vcmask 261120
  %1079 = vst.msk [vmem:[%s6] sm:$0xff] %vm1078, %v1077
  %v1080 = vsel %vm1078, %v1077, 0.0
  %v1081 = vrot.slane %v1080, 4
  %v1082 = vadd.f32 %v1080, %v1081
  %v1083 = vrot.slane %v1082, 2
  %v1084 = vadd.f32 %v1082, %v1083
  %v1085 = vrot.slane %v1084, 1
  %v1086 = vadd.f32 %v1084, %v1085
  %v1087 = vmul.f32 %v1077, %v1077
  %v1088 = vsel %vm1078, %v1087, 0.0
  %v1089 = vrot.slane %v1088, 4
  %v1090 = vadd.f32 %v1088, %v1089
  %v1091 = vrot.slane %v1090, 2
  %v1092 = vadd.f32 %v1090, %v1091
  %v1093 = vrot.slane %v1092, 1
  %v1094 = vadd.f32 %v1092, %v1093
  %1096 = vrot.lane.b32.xlu0 %v1094, 32
  %v1097 = vpop.permute.xlu0 %1096
  %v1099 = vsel %vm1078, %v1086, %v1097
  %vm1100 = vcmask 516096
  %1101 = vst.msk [vmem:[%s7] sm:$0x1] %vm1100, %v1099
  // Predicated region
  $region26: #{network4_forward.1} parent=0 // pred_check
    _
  $region27: #{network4_forward.1} parent=0 // pred_check_branch
    %1103 = sbr.rel (0) target = $region29
  $region28: #{network4_forward.1} parent=0 // pred_region
    _
  $region29: #{network4_forward.1} parent=0 // pred_fallthru
    _
  // Predicated region
  $region30: #{network4_forward.1} parent=0 // pred_check
    _
  $region31: #{network4_forward.1} parent=0 // pred_check_branch
    %1105 = sbr.rel (0) target = $region33
  $region32: #{network4_forward.1} parent=0 // pred_region
    _
  $region33: #{network4_forward.1} parent=0 // pred_fallthru
    _
  // Predicated region
  $region34: #{network4_forward.1} parent=0 // pred_check
    _
  $region35: #{network4_forward.1} parent=0 // pred_check_branch
    %1107 = sbr.rel (0) target = $region37
  $region36: #{network4_forward.1} parent=0 // pred_region
    _
  $region37: #{network4_forward.1} parent=0 // pred_fallthru
    _
  // Predicated region
  $region38: #{network4_forward.1} parent=0 // pred_check
    _
  $region39: #{network4_forward.1} parent=0 // pred_check_branch
    %1109 = sbr.rel (0) target = $region41
  $region40: #{network4_forward.1} parent=0 // pred_region
    _
  $region41: #{network4_forward.1} parent=0 // pred_fallthru
    _

</llo_original>
